<compile_context>
chip_gen: v5e
topology: v5e:2x2
jax: 0.10.0
libtpu: 0.0.40
codegen_flags: <defaults>
</compile_context>

<pallas_src>
import functools

import jax
import jax.numpy as jnp
from jax import lax
from jax.experimental import pallas as pl
from jax.experimental.pallas import tpu as pltpu

# ----------------------------- hyperparams -----------------------------------
n_embed = 32
vocab_size = 65        # stand-in for len(get_vocab())  (tiny-shakespeare sized)
block_size = 8         # context length for the (unused-in-forward) pos table

V_PAD = 128            # lane-dense vocab padding (multiple of 128 lanes)
NEG_INF = -1e30        # padded logit lanes (kills them in softmax / CE)
_HIGHEST = jax.lax.Precision.HIGHEST

_VMEM = pl.BlockSpec(memory_space=pltpu.MemorySpace.VMEM)
_SMEM = pl.BlockSpec(memory_space=pltpu.MemorySpace.SMEM)


# ------------------------------ kernels ---------------------------------------
def _fuse_table_kernel(emb_ref, w_ref, b_ref, out_ref):
    """fused_table = emb_pad @ W_pad + b_pad.

    emb_ref : (V_PAD, C)     f32 VMEM  (rows >= vocab_size are zero)
    w_ref   : (C, V_PAD)     f32 VMEM  (cols >= vocab_size are zero)
    b_ref   : (1, V_PAD)     f32 VMEM  (cols >= vocab_size are NEG_INF)
    out_ref : (V_PAD, V_PAD) f32 VMEM
    """
    out_ref[...] = (
        jnp.dot(emb_ref[...], w_ref[...],
                preferred_element_type=jnp.float32, precision=_HIGHEST)
        + b_ref[...])


def _logits_kernel(idx_ref, table_ref, logits_ref):
    """One-hot row gather of the fused table (single exact MXU matmul).

    idx_ref    : (BT, 1)         int32 VMEM
    table_ref  : (V_PAD, V_PAD)  f32   VMEM
    logits_ref : (BT, V_PAD)     f32   VMEM   (lane-dense)
    """
    bt = idx_ref.shape[0]
    vpad = table_ref.shape[0]
    col = lax.broadcasted_iota(jnp.int32, (bt, vpad), 1)
    onehot = (col == idx_ref[...]).astype(jnp.float32)
    logits_ref[...] = jnp.dot(onehot, table_ref[...],
                              preferred_element_type=jnp.float32,
                              precision=_HIGHEST)


def _gather_and_ce(tokens_ref, table_ref):
    """Shared body: returns (logits (BT, V_PAD) f32, mean-CE scalar f32)."""
    bt = tokens_ref.shape[1]
    vpad = table_ref.shape[0]
    ids = tokens_ref[0]                                         # (BT, 1) idx
    tgt = tokens_ref[1]                                         # (BT, 1) targets
    col = lax.broadcasted_iota(jnp.int32, (bt, vpad), 1)        # reused twice
    onehot = (col == ids).astype(jnp.float32)
    logits = jnp.dot(onehot, table_ref[...],
                     preferred_element_type=jnp.float32,
                     precision=_HIGHEST)                        # (BT, V_PAD)
    # Cross entropy. Padded lanes carry NEG_INF -> exp() underflows to 0 and
    # the max is dominated by real logits, so padding is numerically inert.
    m = jnp.max(logits, axis=-1, keepdims=True)
    lse = jnp.log(jnp.sum(jnp.exp(logits - m), axis=-1, keepdims=True)) + m
    tgt_onehot = (col == tgt).astype(jnp.float32)               # reuse iota
    picked = jnp.sum(tgt_onehot * logits, axis=-1, keepdims=True)
    loss = jnp.sum(lse - picked) * (1.0 / bt)
    return logits, loss


def _logits_ce_kernel(tokens_ref, table_ref, logits_ref, loss_ref):
    """Fused logits + mean cross-entropy (eval path).

    tokens_ref : (2, BT, 1)      int32 VMEM   [0]=idx, [1]=targets
    table_ref  : (V_PAD, V_PAD)  f32   VMEM
    logits_ref : (BT, V_PAD)     f32   VMEM
    loss_ref   : (1, 1)          f32   SMEM
    """
    logits, loss = _gather_and_ce(tokens_ref, table_ref)
    logits_ref[...] = logits
    loss_ref[0, 0] = loss


def _ce_loss_kernel(tokens_ref, table_ref, loss_ref):
    """Loss-only variant (training path): no (BT, V_PAD) HBM writeback."""
    _, loss = _gather_and_ce(tokens_ref, table_ref)
    loss_ref[0, 0] = loss


# ------------------------------ wrappers --------------------------------------
@jax.jit
def fuse_params(emb_table, lm_head_w, lm_head_b):
    """Precompute the lane-padded (V_PAD, V_PAD) fused bigram table once.

    Rows >= vocab_size are never selected; cols >= vocab_size carry NEG_INF so
    they vanish in softmax / CE and are sliced away at the API boundary.
    """
    V, C = emb_table.shape
    emb_pad = jnp.zeros((V_PAD, C), jnp.float32).at[:V].set(emb_table)
    w_pad = jnp.zeros((C, V_PAD), jnp.float32).at[:, :V].set(lm_head_w)
    b_pad = jnp.full((1, V_PAD), NEG_INF, jnp.float32).at[:, :V].set(lm_head_b)
    return pl.pallas_call(
        _fuse_table_kernel,
        out_shape=jax.ShapeDtypeStruct((V_PAD, V_PAD), jnp.float32),
        in_specs=[_VMEM, _VMEM, _VMEM],
        out_specs=_VMEM,
    )(emb_pad, w_pad, b_pad)


def _merge_tokens(idx, targets):
    BT = idx.shape[0] * idx.shape[1]
    return jnp.stack(
        [idx.reshape(BT), targets.reshape(BT)]).astype(jnp.int32).reshape(2, BT, 1)


@functools.partial(jax.jit, static_argnames=("pad_logits",))
def _forward_no_targets(idx, fused_table, *, pad_logits=False):
    """targets=None path -> logits only ((B, T, V) like PyTorch)."""
    B, T = idx.shape
    BT = B * T
    idx_flat = idx.reshape(BT, 1).astype(jnp.int32)
    logits_pad = pl.pallas_call(
        _logits_kernel,
        out_shape=jax.ShapeDtypeStruct((BT, V_PAD), jnp.float32),
        in_specs=[_VMEM, _VMEM],
        out_specs=_VMEM,
    )(idx_flat, fused_table)
    if pad_logits:                       # lane-dense slab for downstream kernels
        return logits_pad.reshape(B, T, V_PAD)
    return logits_pad[:, :vocab_size].reshape(B, T, vocab_size)


@functools.partial(jax.jit, static_argnames=("pad_logits",))
def _forward_with_targets(idx, targets, fused_table, *, pad_logits=False):
    """targets path -> (flat logits, mean cross-entropy) like PyTorch."""
    tokens = _merge_tokens(idx, targets)
    BT = tokens.shape[1]
    logits_pad, loss = pl.pallas_call(
        _logits_ce_kernel,
        out_shape=(jax.ShapeDtypeStruct((BT, V_PAD), jnp.float32),
                   jax.ShapeDtypeStruct((1, 1), jnp.float32)),
        in_specs=[_VMEM, _VMEM],
        out_specs=(_VMEM, _SMEM),
    )(tokens, fused_table)
    loss = loss[0, 0]
    if pad_logits:
        return logits_pad, loss
    return logits_pad[:, :vocab_size], loss


@jax.jit
def bigram_loss(idx, targets, fused_table):
    """Training path: mean cross-entropy only (no logits HBM writeback)."""
    tokens = _merge_tokens(idx, targets)
    loss = pl.pallas_call(
        _ce_loss_kernel,
        out_shape=jax.ShapeDtypeStruct((1, 1), jnp.float32),
        in_specs=[_VMEM, _VMEM],
        out_specs=_SMEM,
    )(tokens, fused_table)
    return loss[0, 0]


def bigram_forward(idx, fused_table, targets=None, *, pad_logits=False):
    """Mirrors BigramLanguageModel.forward. Returns (logits, loss)."""
    if targets is None:
        return _forward_no_targets(idx, fused_table, pad_logits=pad_logits), None
    return _forward_with_targets(idx, targets, fused_table, pad_logits=pad_logits)


def init_params(key):
    """Deterministic init matching the module's __init__ shapes/dtypes."""
    k_tok, k_pos, k_w, k_b = jax.random.split(key, 4)
    # nn.Embedding default init: N(0, 1)
    token_embedding_table = jax.random.normal(
        k_tok, (vocab_size, n_embed), dtype=jnp.float32)
    position_embedding_table = jax.random.normal(          # defined, unused in forward
        k_pos, (block_size, n_embed), dtype=jnp.float32)
    # nn.Linear default init: U(-1/sqrt(fan_in), 1/sqrt(fan_in))
    bound = 1.0 / (n_embed ** 0.5)
    lm_head_w = jax.random.uniform(
        k_w, (n_embed, vocab_size), minval=-bound, maxval=bound,
        dtype=jnp.float32)                                  # stored transposed
    lm_head_b = jax.random.uniform(
        k_b, (1, vocab_size), minval=-bound, maxval=bound, dtype=jnp.float32)
    return token_embedding_table, position_embedding_table, lm_head_w, lm_head_b


# -------------------------------- main ----------------------------------------
if __name__ == "__main__":
    key = jax.random.PRNGKey(0)
    k_params, k_idx, k_tgt = jax.random.split(key, 3)

    emb_table, pos_table, lm_head_w, lm_head_b = init_params(k_params)

    # Fused (V, V) table computed ONCE and reused for every forward call
    # (generation loop / training epoch reuse).
    fused_table = jax.block_until_ready(
        fuse_params(emb_table, lm_head_w, lm_head_b))

    B, T = 2, 8
    idx = jax.random.randint(k_idx, (B, T), 0, vocab_size, dtype=jnp.int32)
    targets = jax.random.randint(k_tgt, (B, T), 0, vocab_size, dtype=jnp.int32)

    # Reference in plain JAX (unpadded params).
    ref_logits = emb_table[idx] @ lm_head_w + lm_head_b[0]
    ref_flat = ref_logits.reshape(B * T, vocab_size)
    ref_loss = jnp.mean(
        jax.nn.logsumexp(ref_flat, axis=-1)
        - ref_flat[jnp.arange(B * T), targets.reshape(-1)])

    # 1) targets=None path -> (B, T, V) logits, loss is None
    logits_no_tgt, loss_none = bigram_forward(idx, fused_table)
    logits_no_tgt = jax.block_until_ready(logits_no_tgt)
    assert logits_no_tgt.shape == (B, T, vocab_size)
    assert loss_none is None
    assert jnp.allclose(logits_no_tgt, ref_logits, atol=1e-5, rtol=1e-5)

    # 1b) lane-dense slab variant (no :vocab_size slice; padded lanes = NEG_INF)
    logits_slab, _ = bigram_forward(idx, fused_table, pad_logits=True)
    logits_slab = jax.block_until_ready(logits_slab)
    assert logits_slab.shape == (B, T, V_PAD)
    assert jnp.allclose(logits_slab[..., :vocab_size], ref_logits,
                        atol=1e-5, rtol=1e-5)

    # 2) targets path -> flat (B*T, V) logits + scalar mean cross-entropy
    logits_flat, loss = bigram_forward(idx, fused_table, targets)
    logits_flat = jax.block_until_ready(logits_flat)
    loss = jax.block_until_ready(loss)
    assert logits_flat.shape == (B * T, vocab_size)
    assert jnp.allclose(logits_flat, ref_flat, atol=1e-5, rtol=1e-5)
    assert jnp.allclose(loss, ref_loss, atol=1e-5, rtol=1e-5)

    # 3) loss-only training variant (skips the logits HBM writeback)
    loss_only = jax.block_until_ready(bigram_loss(idx, targets, fused_table))
    assert jnp.allclose(loss_only, ref_loss, atol=1e-5, rtol=1e-5)

    print("KERNEL_OK")
</pallas_src>

<mosaic_0001>
module attributes {stable_mosaic.version = 11 : i64} {
  func.func @_fuse_table_kernel(%arg0: memref<128x32xf32, #tpu.memory_space<vmem>>, %arg1: memref<32x128xf32, #tpu.memory_space<vmem>>, %arg2: memref<1x128xf32, #tpu.memory_space<vmem>>, %arg3: memref<128x128xf32, #tpu.memory_space<vmem>>) attributes {dimension_semantics = [], scalar_prefetch = 0 : i64, scratch_operands = 0 : i64, tpu.core_type = #tpu.core_type<tc>} {
    %c0 = arith.constant 0 : index
    %c0_0 = arith.constant 0 : index
    %0 = vector.load %arg0[%c0, %c0_0] : memref<128x32xf32, #tpu.memory_space<vmem>>, vector<128x32xf32>
    %c0_1 = arith.constant 0 : index
    %c0_2 = arith.constant 0 : index
    %1 = vector.load %arg1[%c0_1, %c0_2] : memref<32x128xf32, #tpu.memory_space<vmem>>, vector<32x128xf32>
    %cst = arith.constant dense<0.000000e+00> : vector<128x128xf32>
    %2 = tpu.matmul %0, %1, %cst {dimension_numbers = #tpu.dot_dimension_numbers<[1], [0], [0], [1], [0, 0, 1, 1], [], []>, precision = #tpu.contract_precision<fp32>} : vector<128x32xf32>, vector<32x128xf32>, vector<128x128xf32> -> vector<128x128xf32>
    %c0_3 = arith.constant 0 : index
    %c0_4 = arith.constant 0 : index
    %3 = vector.load %arg2[%c0_3, %c0_4] : memref<1x128xf32, #tpu.memory_space<vmem>>, vector<1x128xf32>
    %4 = vector.broadcast %3 : vector<1x128xf32> to vector<128x128xf32>
    %5 = arith.addf %2, %4 : vector<128x128xf32>
    %c0_5 = arith.constant 0 : index
    %c0_6 = arith.constant 0 : index
    %6 = vector.load %arg3[%c0_5, %c0_6] : memref<128x128xf32, #tpu.memory_space<vmem>>, vector<128x128xf32>
    tpu.vector_store %arg3[%c0_5, %c0_6], %5 {strides = array<i32>} : memref<128x128xf32, #tpu.memory_space<vmem>>, vector<128x128xf32>,
    return
  }
}

</mosaic_0001>

<llo_original>
// kernel: fuse_params.1
$region0: #{fuse_params.1}
  #allocation0 [shape = 'u32[]', space=smem, size = 0x4, offset = 0x4, fixed_abs, tag = 'smem constant byte address 0x4 - core index']
  #allocation1 [shape = 'u32[72,128]{1,0:T(1,128)}', space=vmem, size = 0x9000, scoped, tag = 'internal scratch']
  %s0 = inlined_call_operand.vmem [shape: f32[128,32], index: 0, kind: input, shape index: {}]
  %s1 = inlined_call_operand.vmem [shape: f32[32,128], index: 1, kind: input, shape index: {}]
  %s2 = inlined_call_operand.vmem [shape: f32[1,128], index: 2, kind: input, shape index: {}]
  %s3 = inlined_call_operand.hbm [shape: f32[128,128], index: 3, kind: output, shape index: {}]
  %s4 = sld [smem:[#allocation0]]
  $region22: #{fuse_params.1} parent=0
    _
  %s6 = ssub.s32 1, %s4
  %s7 = scalar_select 0, %s6, %s4
  $region1: #{fuse_params.1} parent=0
    #allocation2 [shape = 'u8[65536]{0}', space=vmem, size = 0x10000, scoped, tag = 'output window, operand 0, single buffered']
    #allocation3 [shape = 's32[1]{0}', space=sflag, size = 0x4, scoped, tag = 'scoped memory for fuse_params.1']
    %8 = vsyncpa [#allocation3], 0
    // Predicated region
    $region2: #{fuse_params.1} parent=1 // pred_check
      _
    $region3: #{fuse_params.1} parent=1 // pred_check_branch
      %10 = sbr.rel (0) target = $region5
    $region4: #{fuse_params.1} parent=1 // pred_region
      _
    $region5: #{fuse_params.1} parent=1 // pred_fallthru
      _
    // Predicated region
    $region6: #{fuse_params.1} parent=1 // pred_check
      _
    $region7: #{fuse_params.1} parent=1 // pred_check_branch
      %12 = sbr.rel (0) target = $region9
    $region8: #{fuse_params.1} parent=1 // pred_region
      _
    $region9: #{fuse_params.1} parent=1 // pred_fallthru
      _
    // Predicated region
    $region10: #{fuse_params.1} parent=1 // pred_check
      _
    $region11: #{fuse_params.1} parent=1 // pred_check_branch
      %14 = sbr.rel (0) target = $region13
    $region12: #{fuse_params.1} parent=1 // pred_region
      _
    $region13: #{fuse_params.1} parent=1 // pred_fallthru
      _
    %v15 = vld [vmem:[%s0] sm:$0xff]
    %v16 = vld [vmem:[%s0 + $0x8] sm:$0xff]
    %v17 = vld [vmem:[%s0 + $0x10] sm:$0xff]
    %v18 = vld [vmem:[%s0 + $0x18] sm:$0xff]
    %v19 = vld [vmem:[%s0 + $0x20] sm:$0xff]
    %v20 = vld [vmem:[%s0 + $0x28] sm:$0xff]
    %v21 = vld [vmem:[%s0 + $0x30] sm:$0xff]
    %v22 = vld [vmem:[%s0 + $0x38] sm:$0xff]
    %v23 = vld [vmem:[%s0 + $0x40] sm:$0xff]
    %v24 = vld [vmem:[%s0 + $0x48] sm:$0xff]
    %v25 = vld [vmem:[%s0 + $0x50] sm:$0xff]
    %v26 = vld [vmem:[%s0 + $0x58] sm:$0xff]
    %v27 = vld [vmem:[%s0 + $0x60] sm:$0xff]
    %v28 = vld [vmem:[%s0 + $0x68] sm:$0xff]
    %v29 = vld [vmem:[%s0 + $0x70] sm:$0xff]
    %v30 = vld [vmem:[%s0 + $0x78] sm:$0xff]
    %v31 = vld [vmem:[%s1] sm:$0xff]
    %v32 = vld [vmem:[%s1 + $0x8] sm:$0xff]
    %v33 = vld [vmem:[%s1 + $0x10] sm:$0xff]
    %v34 = vld [vmem:[%s1 + $0x18] sm:$0xff]
    %v35 = vld [vmem:[%s2] sm:$0x1]
    %v37 = vperm.slane %v35, 0
    %vm39 = vcmask 261120
    %v41 = vsel %vm39, %v15, 0
    %v44 = vsel %vm39, %v16, 0
    %v47 = vsel %vm39, %v17, 0
    %v50 = vsel %vm39, %v18, 0
    %v53 = vsel %vm39, %v19, 0
    %v56 = vsel %vm39, %v20, 0
    %v59 = vsel %vm39, %v21, 0
    %v62 = vsel %vm39, %v22, 0
    %v65 = vsel %vm39, %v23, 0
    %v68 = vsel %vm39, %v24, 0
    %v71 = vsel %vm39, %v25, 0
    %v74 = vsel %vm39, %v26, 0
    %v77 = vsel %vm39, %v27, 0
    %v80 = vsel %vm39, %v28, 0
    %v83 = vsel %vm39, %v29, 0
    %v86 = vsel %vm39, %v30, 0
    %88 = vmatpush.msra.mxu0 0.0
    %89 = vmatpush.msra.mxu0 0.0
    %90 = vmatpush.msra.mxu0 0.0
    %91 = vmatpush.msra.mxu0 0.0
    %92 = vmatpush.msra.mxu0 0.0
    %93 = vmatpush.msra.mxu0 0.0
    %94 = vmatpush.msra.mxu0 0.0
    %95 = vmatpush.msra.mxu0 0.0
    %96 = vmatpush.msra.mxu0 0.0
    %97 = vmatpush.msra.mxu0 0.0
    %98 = vmatpush.msra.mxu0 0.0
    %99 = vmatpush.msra.mxu0 0.0
    %v100 = vand.u32 %v34, 4294901760
    %101 = vmatpush.msra.mxu0 %v100
    %v102 = vand.u32 %v33, 4294901760
    %103 = vmatpush.msra.mxu0 %v102
    %v104 = vand.u32 %v32, 4294901760
    %105 = vmatpush.msra.mxu0 %v104
    %v106 = vand.u32 %v31, 4294901760
    %107 = vmatpush.msra.mxu0 %v106
    %v108 = vand.u32 %v41, 4294901760
    %v109 = vsub.f32 %v41, %v108
    %v110 = vand.u32 %v109, 4294901760
    %v111 = vsub.f32 %v109, %v110
    %v112 = vand.u32 %v111, 4294901760
    %113 = vmatmul.f32.gmra.mxu0 %v112
    %v114 = vpop.f32.mrf.mxu0
    %v115 = vadd.f32 %v37, %v114
    %v116 = vand.u32 %v44, 4294901760
    %v117 = vsub.f32 %v44, %v116
    %v118 = vand.u32 %v117, 4294901760
    %v119 = vsub.f32 %v117, %v118
    %v120 = vand.u32 %v119, 4294901760
    %121 = vmatmul.f32.gmra.mxu0 %v120
    %v122 = vpop.f32.mrf.mxu0
    %v123 = vadd.f32 %v37, %v122
    %v124 = vand.u32 %v47, 4294901760
    %v125 = vsub.f32 %v47, %v124
    %v126 = vand.u32 %v125, 4294901760
    %v127 = vsub.f32 %v125, %v126
    %v128 = vand.u32 %v127, 4294901760
    %129 = vmatmul.f32.gmra.mxu0 %v128
    %v130 = vpop.f32.mrf.mxu0
    %v131 = vadd.f32 %v37, %v130
    %v132 = vand.u32 %v50, 4294901760
    %v133 = vsub.f32 %v50, %v132
    %v134 = vand.u32 %v133, 4294901760
    %v135 = vsub.f32 %v133, %v134
    %v136 = vand.u32 %v135, 4294901760
    %137 = vmatmul.f32.gmra.mxu0 %v136
    %v138 = vpop.f32.mrf.mxu0
    %v139 = vadd.f32 %v37, %v138
    %v140 = vand.u32 %v53, 4294901760
    %v141 = vsub.f32 %v53, %v140
    %v142 = vand.u32 %v141, 4294901760
    %v143 = vsub.f32 %v141, %v142
    %v144 = vand.u32 %v143, 4294901760
    %145 = vmatmul.f32.gmra.mxu0 %v144
    %v146 = vpop.f32.mrf.mxu0
    %v147 = vadd.f32 %v37, %v146
    %v148 = vand.u32 %v56, 4294901760
    %v149 = vsub.f32 %v56, %v148
    %v150 = vand.u32 %v149, 4294901760
    %v151 = vsub.f32 %v149, %v150
    %v152 = vand.u32 %v151, 4294901760
    %153 = vmatmul.f32.gmra.mxu0 %v152
    %v154 = vpop.f32.mrf.mxu0
    %v155 = vadd.f32 %v37, %v154
    %v156 = vand.u32 %v59, 4294901760
    %v157 = vsub.f32 %v59, %v156
    %v158 = vand.u32 %v157, 4294901760
    %v159 = vsub.f32 %v157, %v158
    %v160 = vand.u32 %v159, 4294901760
    %161 = vmatmul.f32.gmra.mxu0 %v160
    %v162 = vpop.f32.mrf.mxu0
    %v163 = vadd.f32 %v37, %v162
    %v164 = vand.u32 %v62, 4294901760
    %v165 = vsub.f32 %v62, %v164
    %v166 = vand.u32 %v165, 4294901760
    %v167 = vsub.f32 %v165, %v166
    %v168 = vand.u32 %v167, 4294901760
    %169 = vmatmul.f32.gmra.mxu0 %v168
    %v170 = vpop.f32.mrf.mxu0
    %v171 = vadd.f32 %v37, %v170
    %v172 = vand.u32 %v65, 4294901760
    %v173 = vsub.f32 %v65, %v172
    %v174 = vand.u32 %v173, 4294901760
    %v175 = vsub.f32 %v173, %v174
    %v176 = vand.u32 %v175, 4294901760
    %177 = vmatmul.f32.gmra.mxu0 %v176
    %v178 = vpop.f32.mrf.mxu0
    %v179 = vadd.f32 %v37, %v178
    %v180 = vand.u32 %v68, 4294901760
    %v181 = vsub.f32 %v68, %v180
    %v182 = vand.u32 %v181, 4294901760
    %v183 = vsub.f32 %v181, %v182
    %v184 = vand.u32 %v183, 4294901760
    %185 = vmatmul.f32.gmra.mxu0 %v184
    %v186 = vpop.f32.mrf.mxu0
    %v187 = vadd.f32 %v37, %v186
    %v188 = vand.u32 %v71, 4294901760
    %v189 = vsub.f32 %v71, %v188
    %v190 = vand.u32 %v189, 4294901760
    %v191 = vsub.f32 %v189, %v190
    %v192 = vand.u32 %v191, 4294901760
    %193 = vmatmul.f32.gmra.mxu0 %v192
    %v194 = vpop.f32.mrf.mxu0
    %v195 = vadd.f32 %v37, %v194
    %v196 = vand.u32 %v74, 4294901760
    %v197 = vsub.f32 %v74, %v196
    %v198 = vand.u32 %v197, 4294901760
    %v199 = vsub.f32 %v197, %v198
    %v200 = vand.u32 %v199, 4294901760
    %201 = vmatmul.f32.gmra.mxu0 %v200
    %v202 = vpop.f32.mrf.mxu0
    %v203 = vadd.f32 %v37, %v202
    %v204 = vand.u32 %v77, 4294901760
    %v205 = vsub.f32 %v77, %v204
    %v206 = vand.u32 %v205, 4294901760
    %v207 = vsub.f32 %v205, %v206
    %v208 = vand.u32 %v207, 4294901760
    %209 = vmatmul.f32.gmra.mxu0 %v208
    %v210 = vpop.f32.mrf.mxu0
    %v211 = vadd.f32 %v37, %v210
    %v212 = vand.u32 %v80, 4294901760
    %v213 = vsub.f32 %v80, %v212
    %v214 = vand.u32 %v213, 4294901760
    %v215 = vsub.f32 %v213, %v214
    %v216 = vand.u32 %v215, 4294901760
    %217 = vmatmul.f32.gmra.mxu0 %v216
    %v218 = vpop.f32.mrf.mxu0
    %v219 = vadd.f32 %v37, %v218
    %v220 = vand.u32 %v83, 4294901760
    %v221 = vsub.f32 %v83, %v220
    %v222 = vand.u32 %v221, 4294901760
    %v223 = vsub.f32 %v221, %v222
    %v224 = vand.u32 %v223, 4294901760
    %225 = vmatmul.f32.gmra.mxu0 %v224
    %v226 = vpop.f32.mrf.mxu0
    %v227 = vadd.f32 %v37, %v226
    %v228 = vand.u32 %v86, 4294901760
    %v229 = vsub.f32 %v86, %v228
    %v230 = vand.u32 %v229, 4294901760
    %v231 = vsub.f32 %v229, %v230
    %v232 = vand.u32 %v231, 4294901760
    %233 = vmatmul.f32.gmra.mxu0 %v232
    %v234 = vpop.f32.mrf.mxu0
    %v235 = vadd.f32 %v37, %v234
    %236 = vdwg.mxu0
    %237 = vmatpush.msra.mxu0 0.0
    %238 = vmatpush.msra.mxu0 0.0
    %239 = vmatpush.msra.mxu0 0.0
    %240 = vmatpush.msra.mxu0 0.0
    %241 = vmatpush.msra.mxu0 0.0
    %242 = vmatpush.msra.mxu0 0.0
    %243 = vmatpush.msra.mxu0 0.0
    %244 = vmatpush.msra.mxu0 0.0
    %245 = vmatpush.msra.mxu0 0.0
    %246 = vmatpush.msra.mxu0 0.0
    %247 = vmatpush.msra.mxu0 0.0
    %248 = vmatpush.msra.mxu0 0.0
    %v249 = vand.u32 %v34, 4294901760
    %v250 = vsub.f32 %v34, %v249
    %v251 = vand.u32 %v250, 4294901760
    %v252 = vsub.f32 %v250, %v251
    %v253 = vand.u32 %v252, 4294901760
    %254 = vmatpush.msra.mxu0 %v253
    %v255 = vand.u32 %v33, 4294901760
    %v256 = vsub.f32 %v33, %v255
    %v257 = vand.u32 %v256, 4294901760
    %v258 = vsub.f32 %v256, %v257
    %v259 = vand.u32 %v258, 4294901760
    %260 = vmatpush.msra.mxu0 %v259
    %v261 = vand.u32 %v32, 4294901760
    %v262 = vsub.f32 %v32, %v261
    %v263 = vand.u32 %v262, 4294901760
    %v264 = vsub.f32 %v262, %v263
    %v265 = vand.u32 %v264, 4294901760
    %266 = vmatpush.msra.mxu0 %v265
    %v267 = vand.u32 %v31, 4294901760
    %v268 = vsub.f32 %v31, %v267
    %v269 = vand.u32 %v268, 4294901760
    %v270 = vsub.f32 %v268, %v269
    %v271 = vand.u32 %v270, 4294901760
    %272 = vmatpush.msra.mxu0 %v271
    %v273 = vand.u32 %v41, 4294901760
    %274 = vmatmul.f32.gmra.mxu0 %v273
    %v275 = vpop.f32.mrf.mxu0
    %v276 = vadd.f32 %v115, %v275
    %v277 = vand.u32 %v44, 4294901760
    %278 = vmatmul.f32.gmra.mxu0 %v277
    %v279 = vpop.f32.mrf.mxu0
    %v280 = vadd.f32 %v123, %v279
    %v281 = vand.u32 %v47, 4294901760
    %282 = vmatmul.f32.gmra.mxu0 %v281
    %v283 = vpop.f32.mrf.mxu0
    %v284 = vadd.f32 %v131, %v283
    %v285 = vand.u32 %v50, 4294901760
    %286 = vmatmul.f32.gmra.mxu0 %v285
    %v287 = vpop.f32.mrf.mxu0
    %v288 = vadd.f32 %v139, %v287
    %v289 = vand.u32 %v53, 4294901760
    %290 = vmatmul.f32.gmra.mxu0 %v289
    %v291 = vpop.f32.mrf.mxu0
    %v292 = vadd.f32 %v147, %v291
    %v293 = vand.u32 %v56, 4294901760
    %294 = vmatmul.f32.gmra.mxu0 %v293
    %v295 = vpop.f32.mrf.mxu0
    %v296 = vadd.f32 %v155, %v295
    %v297 = vand.u32 %v59, 4294901760
    %298 = vmatmul.f32.gmra.mxu0 %v297
    %v299 = vpop.f32.mrf.mxu0
    %v300 = vadd.f32 %v163, %v299
    %v301 = vand.u32 %v62, 4294901760
    %302 = vmatmul.f32.gmra.mxu0 %v301
    %v303 = vpop.f32.mrf.mxu0
    %v304 = vadd.f32 %v171, %v303
    %v305 = vand.u32 %v65, 4294901760
    %306 = vmatmul.f32.gmra.mxu0 %v305
    %v307 = vpop.f32.mrf.mxu0
    %v308 = vadd.f32 %v179, %v307
    %v309 = vand.u32 %v68, 4294901760
    %310 = vmatmul.f32.gmra.mxu0 %v309
    %v311 = vpop.f32.mrf.mxu0
    %v312 = vadd.f32 %v187, %v311
    %v313 = vand.u32 %v71, 4294901760
    %314 = vmatmul.f32.gmra.mxu0 %v313
    %v315 = vpop.f32.mrf.mxu0
    %v316 = vadd.f32 %v195, %v315
    %v317 = vand.u32 %v74, 4294901760
    %318 = vmatmul.f32.gmra.mxu0 %v317
    %v319 = vpop.f32.mrf.mxu0
    %v320 = vadd.f32 %v203, %v319
    %v321 = vand.u32 %v77, 4294901760
    %322 = vmatmul.f32.gmra.mxu0 %v321
    %v323 = vpop.f32.mrf.mxu0
    %v324 = vadd.f32 %v211, %v323
    %v325 = vand.u32 %v80, 4294901760
    %326 = vmatmul.f32.gmra.mxu0 %v325
    %v327 = vpop.f32.mrf.mxu0
    %v328 = vadd.f32 %v219, %v327
    %v329 = vand.u32 %v83, 4294901760
    %330 = vmatmul.f32.gmra.mxu0 %v329
    %v331 = vpop.f32.mrf.mxu0
    %v332 = vadd.f32 %v227, %v331
    %v333 = vand.u32 %v86, 4294901760
    %334 = vmatmul.f32.gmra.mxu0 %v333
    %v335 = vpop.f32.mrf.mxu0
    %v336 = vadd.f32 %v235, %v335
    %337 = vdwg.mxu0
    %338 = vmatpush.msra.mxu0 0.0
    %339 = vmatpush.msra.mxu0 0.0
    %340 = vmatpush.msra.mxu0 0.0
    %341 = vmatpush.msra.mxu0 0.0
    %342 = vmatpush.msra.mxu0 0.0
    %343 = vmatpush.msra.mxu0 0.0
    %344 = vmatpush.msra.mxu0 0.0
    %345 = vmatpush.msra.mxu0 0.0
    %346 = vmatpush.msra.mxu0 0.0
    %347 = vmatpush.msra.mxu0 0.0
    %348 = vmatpush.msra.mxu0 0.0
    %349 = vmatpush.msra.mxu0 0.0
    %v350 = vand.u32 %v34, 4294901760
    %v351 = vsub.f32 %v34, %v350
    %352 = vmatpush.msra.mxu0 %v351
    %v353 = vand.u32 %v33, 4294901760
    %v354 = vsub.f32 %v33, %v353
    %355 = vmatpush.msra.mxu0 %v354
    %v356 = vand.u32 %v32, 4294901760
    %v357 = vsub.f32 %v32, %v356
    %358 = vmatpush.msra.mxu0 %v357
    %v359 = vand.u32 %v31, 4294901760
    %v360 = vsub.f32 %v31, %v359
    %361 = vmatpush.msra.mxu0 %v360
    %v362 = vand.u32 %v41, 4294901760
    %v363 = vsub.f32 %v41, %v362
    %364 = vmatmul.f32.gmra.mxu0 %v363
    %v365 = vpop.f32.mrf.mxu0
    %v366 = vadd.f32 %v276, %v365
    %v367 = vand.u32 %v44, 4294901760
    %v368 = vsub.f32 %v44, %v367
    %369 = vmatmul.f32.gmra.mxu0 %v368
    %v370 = vpop.f32.mrf.mxu0
    %v371 = vadd.f32 %v280, %v370
    %v372 = vand.u32 %v47, 4294901760
    %v373 = vsub.f32 %v47, %v372
    %374 = vmatmul.f32.gmra.mxu0 %v373
    %v375 = vpop.f32.mrf.mxu0
    %v376 = vadd.f32 %v284, %v375
    %v377 = vand.u32 %v50, 4294901760
    %v378 = vsub.f32 %v50, %v377
    %379 = vmatmul.f32.gmra.mxu0 %v378
    %v380 = vpop.f32.mrf.mxu0
    %v381 = vadd.f32 %v288, %v380
    %v382 = vand.u32 %v53, 4294901760
    %v383 = vsub.f32 %v53, %v382
    %384 = vmatmul.f32.gmra.mxu0 %v383
    %v385 = vpop.f32.mrf.mxu0
    %v386 = vadd.f32 %v292, %v385
    %v387 = vand.u32 %v56, 4294901760
    %v388 = vsub.f32 %v56, %v387
    %389 = vmatmul.f32.gmra.mxu0 %v388
    %v390 = vpop.f32.mrf.mxu0
    %v391 = vadd.f32 %v296, %v390
    %v392 = vand.u32 %v59, 4294901760
    %v393 = vsub.f32 %v59, %v392
    %394 = vmatmul.f32.gmra.mxu0 %v393
    %v395 = vpop.f32.mrf.mxu0
    %v396 = vadd.f32 %v300, %v395
    %v397 = vand.u32 %v62, 4294901760
    %v398 = vsub.f32 %v62, %v397
    %399 = vmatmul.f32.gmra.mxu0 %v398
    %v400 = vpop.f32.mrf.mxu0
    %v401 = vadd.f32 %v304, %v400
    %v402 = vand.u32 %v65, 4294901760
    %v403 = vsub.f32 %v65, %v402
    %404 = vmatmul.f32.gmra.mxu0 %v403
    %v405 = vpop.f32.mrf.mxu0
    %v406 = vadd.f32 %v308, %v405
    %v407 = vand.u32 %v68, 4294901760
    %v408 = vsub.f32 %v68, %v407
    %409 = vmatmul.f32.gmra.mxu0 %v408
    %v410 = vpop.f32.mrf.mxu0
    %v411 = vadd.f32 %v312, %v410
    %v412 = vand.u32 %v71, 4294901760
    %v413 = vsub.f32 %v71, %v412
    %414 = vmatmul.f32.gmra.mxu0 %v413
    %v415 = vpop.f32.mrf.mxu0
    %v416 = vadd.f32 %v316, %v415
    %v417 = vand.u32 %v74, 4294901760
    %v418 = vsub.f32 %v74, %v417
    %419 = vmatmul.f32.gmra.mxu0 %v418
    %v420 = vpop.f32.mrf.mxu0
    %v421 = vadd.f32 %v320, %v420
    %v422 = vand.u32 %v77, 4294901760
    %v423 = vsub.f32 %v77, %v422
    %424 = vmatmul.f32.gmra.mxu0 %v423
    %v425 = vpop.f32.mrf.mxu0
    %v426 = vadd.f32 %v324, %v425
    %v427 = vand.u32 %v80, 4294901760
    %v428 = vsub.f32 %v80, %v427
    %429 = vmatmul.f32.gmra.mxu0 %v428
    %v430 = vpop.f32.mrf.mxu0
    %v431 = vadd.f32 %v328, %v430
    %v432 = vand.u32 %v83, 4294901760
    %v433 = vsub.f32 %v83, %v432
    %434 = vmatmul.f32.gmra.mxu0 %v433
    %v435 = vpop.f32.mrf.mxu0
    %v436 = vadd.f32 %v332, %v435
    %v437 = vand.u32 %v86, 4294901760
    %v438 = vsub.f32 %v86, %v437
    %439 = vmatmul.f32.gmra.mxu0 %v438
    %v440 = vpop.f32.mrf.mxu0
    %v441 = vadd.f32 %v336, %v440
    %442 = vdwg.mxu0
    %443 = vmatpush.msra.mxu0 0.0
    %444 = vmatpush.msra.mxu0 0.0
    %445 = vmatpush.msra.mxu0 0.0
    %446 = vmatpush.msra.mxu0 0.0
    %447 = vmatpush.msra.mxu0 0.0
    %448 = vmatpush.msra.mxu0 0.0
    %449 = vmatpush.msra.mxu0 0.0
    %450 = vmatpush.msra.mxu0 0.0
    %451 = vmatpush.msra.mxu0 0.0
    %452 = vmatpush.msra.mxu0 0.0
    %453 = vmatpush.msra.mxu0 0.0
    %454 = vmatpush.msra.mxu0 0.0
    %v455 = vand.u32 %v34, 4294901760
    %456 = vmatpush.msra.mxu0 %v455
    %v457 = vand.u32 %v33, 4294901760
    %458 = vmatpush.msra.mxu0 %v457
    %v459 = vand.u32 %v32, 4294901760
    %460 = vmatpush.msra.mxu0 %v459
    %v461 = vand.u32 %v31, 4294901760
    %462 = vmatpush.msra.mxu0 %v461
    %v463 = vand.u32 %v41, 4294901760
    %v464 = vsub.f32 %v41, %v463
    %v465 = vand.u32 %v464, 4294901760
    %466 = vmatmul.f32.gmra.mxu0 %v465
    %v467 = vpop.f32.mrf.mxu0
    %v468 = vadd.f32 %v366, %v467
    %v469 = vand.u32 %v44, 4294901760
    %v470 = vsub.f32 %v44, %v469
    %v471 = vand.u32 %v470, 4294901760
    %472 = vmatmul.f32.gmra.mxu0 %v471
    %v473 = vpop.f32.mrf.mxu0
    %v474 = vadd.f32 %v371, %v473
    %v475 = vand.u32 %v47, 4294901760
    %v476 = vsub.f32 %v47, %v475
    %v477 = vand.u32 %v476, 4294901760
    %478 = vmatmul.f32.gmra.mxu0 %v477
    %v479 = vpop.f32.mrf.mxu0
    %v480 = vadd.f32 %v376, %v479
    %v481 = vand.u32 %v50, 4294901760
    %v482 = vsub.f32 %v50, %v481
    %v483 = vand.u32 %v482, 4294901760
    %484 = vmatmul.f32.gmra.mxu0 %v483
    %v485 = vpop.f32.mrf.mxu0
    %v486 = vadd.f32 %v381, %v485
    %v487 = vand.u32 %v53, 4294901760
    %v488 = vsub.f32 %v53, %v487
    %v489 = vand.u32 %v488, 4294901760
    %490 = vmatmul.f32.gmra.mxu0 %v489
    %v491 = vpop.f32.mrf.mxu0
    %v492 = vadd.f32 %v386, %v491
    %v493 = vand.u32 %v56, 4294901760
    %v494 = vsub.f32 %v56, %v493
    %v495 = vand.u32 %v494, 4294901760
    %496 = vmatmul.f32.gmra.mxu0 %v495
    %v497 = vpop.f32.mrf.mxu0
    %v498 = vadd.f32 %v391, %v497
    %v499 = vand.u32 %v59, 4294901760
    %v500 = vsub.f32 %v59, %v499
    %v501 = vand.u32 %v500, 4294901760
    %502 = vmatmul.f32.gmra.mxu0 %v501
    %v503 = vpop.f32.mrf.mxu0
    %v504 = vadd.f32 %v396, %v503
    %v505 = vand.u32 %v62, 4294901760
    %v506 = vsub.f32 %v62, %v505
    %v507 = vand.u32 %v506, 4294901760
    %508 = vmatmul.f32.gmra.mxu0 %v507
    %v509 = vpop.f32.mrf.mxu0
    %v510 = vadd.f32 %v401, %v509
    %v511 = vand.u32 %v65, 4294901760
    %v512 = vsub.f32 %v65, %v511
    %v513 = vand.u32 %v512, 4294901760
    %514 = vmatmul.f32.gmra.mxu0 %v513
    %v515 = vpop.f32.mrf.mxu0
    %v516 = vadd.f32 %v406, %v515
    %v517 = vand.u32 %v68, 4294901760
    %v518 = vsub.f32 %v68, %v517
    %v519 = vand.u32 %v518, 4294901760
    %520 = vmatmul.f32.gmra.mxu0 %v519
    %v521 = vpop.f32.mrf.mxu0
    %v522 = vadd.f32 %v411, %v521
    %v523 = vand.u32 %v71, 4294901760
    %v524 = vsub.f32 %v71, %v523
    %v525 = vand.u32 %v524, 4294901760
    %526 = vmatmul.f32.gmra.mxu0 %v525
    %v527 = vpop.f32.mrf.mxu0
    %v528 = vadd.f32 %v416, %v527
    %v529 = vand.u32 %v74, 4294901760
    %v530 = vsub.f32 %v74, %v529
    %v531 = vand.u32 %v530, 4294901760
    %532 = vmatmul.f32.gmra.mxu0 %v531
    %v533 = vpop.f32.mrf.mxu0
    %v534 = vadd.f32 %v421, %v533
    %v535 = vand.u32 %v77, 4294901760
    %v536 = vsub.f32 %v77, %v535
    %v537 = vand.u32 %v536, 4294901760
    %538 = vmatmul.f32.gmra.mxu0 %v537
    %v539 = vpop.f32.mrf.mxu0
    %v540 = vadd.f32 %v426, %v539
    %v541 = vand.u32 %v80, 4294901760
    %v542 = vsub.f32 %v80, %v541
    %v543 = vand.u32 %v542, 4294901760
    %544 = vmatmul.f32.gmra.mxu0 %v543
    %v545 = vpop.f32.mrf.mxu0
    %v546 = vadd.f32 %v431, %v545
    %v547 = vand.u32 %v83, 4294901760
    %v548 = vsub.f32 %v83, %v547
    %v549 = vand.u32 %v548, 4294901760
    %550 = vmatmul.f32.gmra.mxu0 %v549
    %v551 = vpop.f32.mrf.mxu0
    %v552 = vadd.f32 %v436, %v551
    %v553 = vand.u32 %v86, 4294901760
    %v554 = vsub.f32 %v86, %v553
    %v555 = vand.u32 %v554, 4294901760
    %556 = vmatmul.f32.gmra.mxu0 %v555
    %v557 = vpop.f32.mrf.mxu0
    %v558 = vadd.f32 %v441, %v557
    %559 = vdwg.mxu0
    %560 = vmatpush.msra.mxu0 0.0
    %561 = vmatpush.msra.mxu0 0.0
    %562 = vmatpush.msra.mxu0 0.0
    %563 = vmatpush.msra.mxu0 0.0
    %564 = vmatpush.msra.mxu0 0.0
    %565 = vmatpush.msra.mxu0 0.0
    %566 = vmatpush.msra.mxu0 0.0
    %567 = vmatpush.msra.mxu0 0.0
    %568 = vmatpush.msra.mxu0 0.0
    %569 = vmatpush.msra.mxu0 0.0
    %570 = vmatpush.msra.mxu0 0.0
    %571 = vmatpush.msra.mxu0 0.0
    %v572 = vand.u32 %v34, 4294901760
    %v573 = vsub.f32 %v34, %v572
    %v574 = vand.u32 %v573, 4294901760
    %575 = vmatpush.msra.mxu0 %v574
    %v576 = vand.u32 %v33, 4294901760
    %v577 = vsub.f32 %v33, %v576
    %v578 = vand.u32 %v577, 4294901760
    %579 = vmatpush.msra.mxu0 %v578
    %v580 = vand.u32 %v32, 4294901760
    %v581 = vsub.f32 %v32, %v580
    %v582 = vand.u32 %v581, 4294901760
    %583 = vmatpush.msra.mxu0 %v582
    %v584 = vand.u32 %v31, 4294901760
    %v585 = vsub.f32 %v31, %v584
    %v586 = vand.u32 %v585, 4294901760
    %587 = vmatpush.msra.mxu0 %v586
    %v588 = vand.u32 %v41, 4294901760
    %589 = vmatmul.f32.gmra.mxu0 %v588
    %v590 = vpop.f32.mrf.mxu0
    %v591 = vadd.f32 %v468, %v590
    %v592 = vand.u32 %v44, 4294901760
    %593 = vmatmul.f32.gmra.mxu0 %v592
    %v594 = vpop.f32.mrf.mxu0
    %v595 = vadd.f32 %v474, %v594
    %v596 = vand.u32 %v47, 4294901760
    %597 = vmatmul.f32.gmra.mxu0 %v596
    %v598 = vpop.f32.mrf.mxu0
    %v599 = vadd.f32 %v480, %v598
    %v600 = vand.u32 %v50, 4294901760
    %601 = vmatmul.f32.gmra.mxu0 %v600
    %v602 = vpop.f32.mrf.mxu0
    %v603 = vadd.f32 %v486, %v602
    %v604 = vand.u32 %v53, 4294901760
    %605 = vmatmul.f32.gmra.mxu0 %v604
    %v606 = vpop.f32.mrf.mxu0
    %v607 = vadd.f32 %v492, %v606
    %v608 = vand.u32 %v56, 4294901760
    %609 = vmatmul.f32.gmra.mxu0 %v608
    %v610 = vpop.f32.mrf.mxu0
    %v611 = vadd.f32 %v498, %v610
    %v612 = vand.u32 %v59, 4294901760
    %613 = vmatmul.f32.gmra.mxu0 %v612
    %v614 = vpop.f32.mrf.mxu0
    %v615 = vadd.f32 %v504, %v614
    %v616 = vand.u32 %v62, 4294901760
    %617 = vmatmul.f32.gmra.mxu0 %v616
    %v618 = vpop.f32.mrf.mxu0
    %v619 = vadd.f32 %v510, %v618
    %v620 = vand.u32 %v65, 4294901760
    %621 = vmatmul.f32.gmra.mxu0 %v620
    %v622 = vpop.f32.mrf.mxu0
    %v623 = vadd.f32 %v516, %v622
    %v624 = vand.u32 %v68, 4294901760
    %625 = vmatmul.f32.gmra.mxu0 %v624
    %v626 = vpop.f32.mrf.mxu0
    %v627 = vadd.f32 %v522, %v626
    %v628 = vand.u32 %v71, 4294901760
    %629 = vmatmul.f32.gmra.mxu0 %v628
    %v630 = vpop.f32.mrf.mxu0
    %v631 = vadd.f32 %v528, %v630
    %v632 = vand.u32 %v74, 4294901760
    %633 = vmatmul.f32.gmra.mxu0 %v632
    %v634 = vpop.f32.mrf.mxu0
    %v635 = vadd.f32 %v534, %v634
    %v636 = vand.u32 %v77, 4294901760
    %637 = vmatmul.f32.gmra.mxu0 %v636
    %v638 = vpop.f32.mrf.mxu0
    %v639 = vadd.f32 %v540, %v638
    %v640 = vand.u32 %v80, 4294901760
    %641 = vmatmul.f32.gmra.mxu0 %v640
    %v642 = vpop.f32.mrf.mxu0
    %v643 = vadd.f32 %v546, %v642
    %v644 = vand.u32 %v83, 4294901760
    %645 = vmatmul.f32.gmra.mxu0 %v644
    %v646 = vpop.f32.mrf.mxu0
    %v647 = vadd.f32 %v552, %v646
    %v648 = vand.u32 %v86, 4294901760
    %649 = vmatmul.f32.gmra.mxu0 %v648
    %v650 = vpop.f32.mrf.mxu0
    %v651 = vadd.f32 %v558, %v650
    %652 = vdwg.mxu0
    %653 = vmatpush.msra.mxu0 0.0
    %654 = vmatpush.msra.mxu0 0.0
    %655 = vmatpush.msra.mxu0 0.0
    %656 = vmatpush.msra.mxu0 0.0
    %657 = vmatpush.msra.mxu0 0.0
    %658 = vmatpush.msra.mxu0 0.0
    %659 = vmatpush.msra.mxu0 0.0
    %660 = vmatpush.msra.mxu0 0.0
    %661 = vmatpush.msra.mxu0 0.0
    %662 = vmatpush.msra.mxu0 0.0
    %663 = vmatpush.msra.mxu0 0.0
    %664 = vmatpush.msra.mxu0 0.0
    %v665 = vand.u32 %v34, 4294901760
    %666 = vmatpush.msra.mxu0 %v665
    %v667 = vand.u32 %v33, 4294901760
    %668 = vmatpush.msra.mxu0 %v667
    %v669 = vand.u32 %v32, 4294901760
    %670 = vmatpush.msra.mxu0 %v669
    %v671 = vand.u32 %v31, 4294901760
    %672 = vmatpush.msra.mxu0 %v671
    %v673 = vand.u32 %v41, 4294901760
    %674 = vmatmul.f32.gmra.mxu0 %v673
    %v675 = vpop.f32.mrf.mxu0
    %v676 = vadd.f32 %v591, %v675
    %v677 = vand.u32 %v44, 4294901760
    %678 = vmatmul.f32.gmra.mxu0 %v677
    %v679 = vpop.f32.mrf.mxu0
    %v680 = vadd.f32 %v595, %v679
    %v681 = vand.u32 %v47, 4294901760
    %682 = vmatmul.f32.gmra.mxu0 %v681
    %v683 = vpop.f32.mrf.mxu0
    %v684 = vadd.f32 %v599, %v683
    %v685 = vand.u32 %v50, 4294901760
    %686 = vmatmul.f32.gmra.mxu0 %v685
    %v687 = vpop.f32.mrf.mxu0
    %v688 = vadd.f32 %v603, %v687
    %v689 = vand.u32 %v53, 4294901760
    %690 = vmatmul.f32.gmra.mxu0 %v689
    %v691 = vpop.f32.mrf.mxu0
    %v692 = vadd.f32 %v607, %v691
    %v693 = vand.u32 %v56, 4294901760
    %694 = vmatmul.f32.gmra.mxu0 %v693
    %v695 = vpop.f32.mrf.mxu0
    %v696 = vadd.f32 %v611, %v695
    %v697 = vand.u32 %v59, 4294901760
    %698 = vmatmul.f32.gmra.mxu0 %v697
    %v699 = vpop.f32.mrf.mxu0
    %v700 = vadd.f32 %v615, %v699
    %v701 = vand.u32 %v62, 4294901760
    %702 = vmatmul.f32.gmra.mxu0 %v701
    %v703 = vpop.f32.mrf.mxu0
    %v704 = vadd.f32 %v619, %v703
    %v705 = vand.u32 %v65, 4294901760
    %706 = vmatmul.f32.gmra.mxu0 %v705
    %v707 = vpop.f32.mrf.mxu0
    %v708 = vadd.f32 %v623, %v707
    %v709 = vand.u32 %v68, 4294901760
    %710 = vmatmul.f32.gmra.mxu0 %v709
    %v711 = vpop.f32.mrf.mxu0
    %v712 = vadd.f32 %v627, %v711
    %v713 = vand.u32 %v71, 4294901760
    %714 = vmatmul.f32.gmra.mxu0 %v713
    %v715 = vpop.f32.mrf.mxu0
    %v716 = vadd.f32 %v631, %v715
    %v717 = vand.u32 %v74, 4294901760
    %718 = vmatmul.f32.gmra.mxu0 %v717
    %v719 = vpop.f32.mrf.mxu0
    %v720 = vadd.f32 %v635, %v719
    %v721 = vand.u32 %v77, 4294901760
    %722 = vmatmul.f32.gmra.mxu0 %v721
    %v723 = vpop.f32.mrf.mxu0
    %v724 = vadd.f32 %v639, %v723
    %v725 = vand.u32 %v80, 4294901760
    %726 = vmatmul.f32.gmra.mxu0 %v725
    %v727 = vpop.f32.mrf.mxu0
    %v728 = vadd.f32 %v643, %v727
    %v729 = vand.u32 %v83, 4294901760
    %730 = vmatmul.f32.gmra.mxu0 %v729
    %v731 = vpop.f32.mrf.mxu0
    %v732 = vadd.f32 %v647, %v731
    %v733 = vand.u32 %v86, 4294901760
    %734 = vmatmul.f32.gmra.mxu0 %v733
    %v735 = vpop.f32.mrf.mxu0
    %v736 = vadd.f32 %v651, %v735
    %737 = vdwg.mxu0
    %738 = vst [vmem:[#allocation2] sm:$0xff] %v676
    %739 = vst [vmem:[#allocation2 + $0x8] sm:$0xff] %v680
    %740 = vst [vmem:[#allocation2 + $0x10] sm:$0xff] %v684
    %741 = vst [vmem:[#allocation2 + $0x18] sm:$0xff] %v688
    %742 = vst [vmem:[#allocation2 + $0x20] sm:$0xff] %v692
    %743 = vst [vmem:[#allocation2 + $0x28] sm:$0xff] %v696
    %744 = vst [vmem:[#allocation2 + $0x30] sm:$0xff] %v700
    %745 = vst [vmem:[#allocation2 + $0x38] sm:$0xff] %v704
    %746 = vst [vmem:[#allocation2 + $0x40] sm:$0xff] %v708
    %747 = vst [vmem:[#allocation2 + $0x48] sm:$0xff] %v712
    %748 = vst [vmem:[#allocation2 + $0x50] sm:$0xff] %v716
    %749 = vst [vmem:[#allocation2 + $0x58] sm:$0xff] %v720
    %750 = vst [vmem:[#allocation2 + $0x60] sm:$0xff] %v724
    %751 = vst [vmem:[#allocation2 + $0x68] sm:$0xff] %v728
    %752 = vst [vmem:[#allocation2 + $0x70] sm:$0xff] %v732
    %753 = vst [vmem:[#allocation2 + $0x78] sm:$0xff] %v736
    // Predicated region
    $region14: #{fuse_params.1} parent=1 // pred_check
      _
    $region15: #{fuse_params.1} parent=1 // pred_check_branch
      %755 = sbr.rel (0) target = $region17
    $region16: #{fuse_params.1} parent=1 // pred_region
      %757 = vsyncadd [#allocation3], 0
      %s758 = sshll.u32 [#allocation2], 4
      %s759 = int_to_ptr.vmem [resolvable:$true] %s758
      %s760 = sshll.u32 %s3, 4
      %s761 = int_to_ptr.hbm [resolvable:$true] %s760
      %766 = dma.vmem_to_hbm [thread:$0]  %s759, 2048, %s761, [#allocation3], 128, 128, 8
    $region17: #{fuse_params.1} parent=1 // pred_fallthru
      _
    // Predicated region
    $region18: #{fuse_params.1} parent=1 // pred_check
      _
    $region19: #{fuse_params.1} parent=1 // pred_check_branch
      %768 = sbr.rel (0) target = $region21
    $region20: #{fuse_params.1} parent=1 // pred_region
      %770 = dma.done [#allocation3], 2048
    $region21: #{fuse_params.1} parent=1 // pred_fallthru
      _
    %771 = vsyncpa [#allocation3], 1

</llo_original>
